<compile_context>
chip_gen: v7x
topology: tpu7x:2x2x1
jax: 0.10.0
libtpu: 0.0.40
codegen_flags: <defaults>
</compile_context>

<pallas_src>
import functools

import jax
import jax.numpy as jnp
from jax.experimental import pallas as pl
from jax.experimental.pallas import tpu as pltpu


# ---------------------------------------------------------------------------
# Kernel 1: one-shot y preprocessing -> normalized, bf16, transposed (D, N).
# ---------------------------------------------------------------------------
def _normalize_t_kernel(y_ref, yt_ref, *, eps):
    y = y_ref[...].astype(jnp.float32)                       # (block_n, D)
    # 1/max(||v||, eps) == rsqrt(max(||v||^2, eps^2))  -> single EUP rsqrt.
    inv = jax.lax.rsqrt(jnp.maximum(jnp.sum(y * y, axis=-1, keepdims=True), eps * eps))
    yt_ref[...] = ((y * inv).T).astype(jnp.bfloat16)          # (D, block_n)


def _normalize_y_t(y, *, eps, block_n=None):
    N, D = y.shape
    if block_n is None:
        block_n = N
        for cand in (1024, 512, 256):
            if cand < N and N % cand == 0:
                block_n = cand
                break
    assert N % block_n == 0
    grid = (N // block_n,)

    kernel = functools.partial(_normalize_t_kernel, eps=float(eps))
    cost = pl.CostEstimate(
        flops=int(3 * N * D),
        transcendentals=int(N),
        bytes_accessed=int(y.dtype.itemsize * N * D + 2 * N * D),
    )
    return pl.pallas_call(
        kernel,
        out_shape=jax.ShapeDtypeStruct((D, N), jnp.bfloat16),
        grid_spec=pltpu.PrefetchScalarGridSpec(
            num_scalar_prefetch=0,
            grid=grid,
            in_specs=[pl.BlockSpec((block_n, D), lambda j: (j, 0))],
            out_specs=pl.BlockSpec((D, block_n), lambda j: (0, j)),
        ),
        compiler_params=pltpu.CompilerParams(
            dimension_semantics=("parallel",),
            vmem_limit_bytes=int(min(max(8 * block_n * D * 4, 16 << 20), 56 << 20)),
        ),
        cost_estimate=cost,
    )(y)


# ---------------------------------------------------------------------------
# Kernel 2: per-row-tile cosine matrix + hinge, per-tile partial sum output.
# ---------------------------------------------------------------------------
def _consistency_loss_kernel(x_ref, ynt_ref, o_ref, *, n_samp, n_neg, margin, eps):
    i = pl.program_id(0)

    x = x_ref[...].astype(jnp.float32)                        # (tile_b, D)
    tile_b = x.shape[0]

    # Row-wise cosine normalization of the x tile (eps folded into squared norm).
    x_inv = jax.lax.rsqrt(jnp.maximum(jnp.sum(x * x, axis=-1, keepdims=True), eps * eps))
    xn = (x * x_inv).astype(jnp.bfloat16)

    ynt = ynt_ref[...]                                        # (D, N) bf16, pre-normalized
    N = ynt.shape[1]

    # S[r, j] = cos(x_{row0+r}, y_j): bf16 operands, f32 MXU accumulation,
    # plain (tile_b, D) x (D, N) matmul (no per-step transpose of y).
    S = jnp.dot(xn, ynt, preferred_element_type=jnp.float32)  # (tile_b, N)

    # Positive-pair mask for this row tile (two comparisons, no integer divide).
    row0 = i * tile_b
    rows = jax.lax.broadcasted_iota(jnp.int32, (tile_b, N), 0) + row0
    cols = jax.lax.broadcasted_iota(jnp.int32, (tile_b, N), 1)
    lo = rows * n_samp
    pos = (cols >= lo) & (cols < lo + n_samp)

    # Negatives: s_neg[:, p] = S[:, (p + d) % N]  == roll S left by d lanes.
    # Mask fused into the small unrolled loop; only a (tile_b, 1) running vector
    # stays live instead of a full (tile_b, N) hinge buffer.
    part = jnp.zeros((tile_b, 1), jnp.float32)
    for m in range(n_neg):                                    # n_neg is tiny & static
        d = ((m + 1) * n_samp) % N
        s_neg = jnp.roll(S, -d, axis=1)
        hinge = jnp.maximum(margin + s_neg - S, 0.0)
        part = part + jnp.sum(jnp.where(pos, hinge, 0.0), axis=-1, keepdims=True)

    o_ref[0, 0] = jnp.sum(part)                               # per-tile partial sum


def _pick_block_b(B, N, D):
    # Small problems: single grid step, no pipeline / partial-sum overhead.
    if B <= 256:
        return B
    # Prefer MXU-friendly row tiles (256 fills the v6e/v7x MXU rows, 128 the v5e
    # MXU), largest that divides B and fits a rough VMEM budget for the
    # (block_b, N) f32 intermediates + resident bf16 yn_t.
    budget = 40 * 1024 * 1024
    for cand in (512, 256, 128, 64, 32, 16, 8):
        if cand <= B and B % cand == 0:
            need = (2 * D * N * 2          # yn_t bf16 (constant pipelined block)
                    + 2 * cand * D * 4     # x f32 tile, double-buffered
                    + 6 * cand * N * 4)    # S / rolled S / hinge / mask intermediates
            if need <= budget:
                return cand
    return B


def consistency_loss(x, y, *, n_samp, n_neg, margin, eps=1e-8, block_b=None):
    B, D = x.shape
    N, D2 = y.shape
    assert D == D2 and N == B * n_samp
    assert 0 < n_neg < B, "negatives are drawn from other samples' y blocks"

    # One-shot y preprocessing (normalize + bf16 + transpose) -- hoisted out of
    # the per-row-tile grid entirely.
    ynt = _normalize_y_t(y, eps=eps)                          # (D, N) bf16

    if block_b is None:
        block_b = _pick_block_b(B, N, D)
    assert B % block_b == 0
    num_tiles = B // block_b

    kernel = functools.partial(
        _consistency_loss_kernel,
        n_samp=int(n_samp), n_neg=int(n_neg),
        margin=float(margin), eps=float(eps),
    )

    # VMEM limit derived from actual buffer sizes; capped at 56 MiB so it is safe
    # on v7x (64 MiB physical) while still exceeding the 32 MiB scoped default.
    vmem_need = (2 * D * N * 2            # yn_t bf16 (pipeline buffers, constant index)
                 + 2 * block_b * D * 4    # x f32 tile, double-buffered
                 + 6 * block_b * N * 4)   # f32 intermediates
    vmem_limit = int(min(max(2 * vmem_need, 16 << 20), 56 << 20))

    cost = pl.CostEstimate(
        flops=int(2 * B * N * D + 3 * B * D + 5 * n_neg * B * N),
        transcendentals=int(B),
        bytes_accessed=int(x.dtype.itemsize * B * D + 2 * N * D + 4 * num_tiles),
    )

    partials = pl.pallas_call(
        kernel,
        out_shape=jax.ShapeDtypeStruct((num_tiles, 1), jnp.float32),
        grid_spec=pltpu.PrefetchScalarGridSpec(
            num_scalar_prefetch=0,
            grid=(num_tiles,),
            in_specs=[
                pl.BlockSpec((block_b, D), lambda i: (i, 0)),   # x row tile (pipelined)
                pl.BlockSpec((D, N), lambda i: (0, 0)),         # yn_t, constant block
            ],
            out_specs=pl.BlockSpec((1, 1), lambda i: (i, 0),
                                   memory_space=pltpu.MemorySpace.SMEM),
        ),
        compiler_params=pltpu.CompilerParams(
            # Per-tile independent partial sums -> safe to shard row tiles across
            # both TensorCores on v7x (no-op on single-TC v5e/v6e).
            dimension_semantics=("parallel",),
            vmem_limit_bytes=vmem_limit,
        ),
        cost_estimate=cost,
    )(x, ynt)

    # Tiny final reduction + mean in XLA.
    return jnp.sum(partials) / jnp.float32(B * n_samp * n_neg)


# ---------------------------------------------------------------------------
# Pure-JAX references.
# ---------------------------------------------------------------------------
def _reference(x, y, n_samp, n_neg, margin, eps, match_kernel_dtype=False):
    x = x.astype(jnp.float32)
    y = y.astype(jnp.float32)
    if match_kernel_dtype:
        # Mirrors the kernel's rsqrt + bf16-cast matmul path (tight check).
        x_inv = jax.lax.rsqrt(jnp.maximum(jnp.sum(x * x, -1, keepdims=True), eps * eps))
        y_inv = jax.lax.rsqrt(jnp.maximum(jnp.sum(y * y, -1, keepdims=True), eps * eps))
        xn = (x * x_inv).astype(jnp.bfloat16)
        ynt = ((y * y_inv).T).astype(jnp.bfloat16)
        S = jnp.dot(xn, ynt, preferred_element_type=jnp.float32)
    else:
        # Pure f32 semantics (loose check; bf16 operands cost ~3 decimal digits).
        xn = x / jnp.maximum(jnp.linalg.norm(x, axis=-1, keepdims=True), eps)
        yn = y / jnp.maximum(jnp.linalg.norm(y, axis=-1, keepdims=True), eps)
        S = xn @ yn.T
    B, N = S.shape
    rows = jnp.arange(B)[:, None]
    cols = jnp.arange(N)[None, :]
    pos_mask = (cols // n_samp) == rows
    total = jnp.zeros((), jnp.float32)
    for m in range(n_neg):
        d = ((m + 1) * n_samp) % N
        s_neg = S[:, (jnp.arange(N) + d) % N]
        hinge = jnp.maximum(margin + s_neg - S, 0.0)
        total = total + jnp.sum(jnp.where(pos_mask, hinge, 0.0))
    return total / (B * n_samp * n_neg)


if __name__ == "__main__":
    # Small, lane-dense shapes: N = B * n_samp = 128, D = 128.
    B, n_samp, n_neg, D = 16, 8, 3, 128
    margin, eps = 0.2, 1e-8

    key = jax.random.PRNGKey(0)
    kx, ky = jax.random.split(key)
    x = jax.random.normal(kx, (B, D), dtype=jnp.float32)
    y = jax.random.normal(ky, (B * n_samp, D), dtype=jnp.float32)

    # Default picker: B is small -> single grid step (block_b = B); MXU-sized
    # tiles kick in automatically for larger B.
    loss = consistency_loss(x, y, n_samp=n_samp, n_neg=n_neg, margin=margin, eps=eps)
    loss = jax.block_until_ready(loss)

    # Tight check against a reference mirroring the kernel's bf16-matmul math.
    ref_exact = _reference(x, y, n_samp, n_neg, margin, eps, match_kernel_dtype=True)
    assert jnp.allclose(loss, ref_exact, rtol=1e-3, atol=1e-4), (loss, ref_exact)

    # Loose check against pure-f32 semantics.
    ref_f32 = _reference(x, y, n_samp, n_neg, margin, eps, match_kernel_dtype=False)
    assert jnp.allclose(loss, ref_f32, rtol=5e-2, atol=1e-2), (loss, ref_f32)

    # Correctness check of the multi-tile ("parallel" grid + per-tile partials)
    # path; production tile sizing comes from the picker, not this tiny override.
    loss_tiled = consistency_loss(x, y, n_samp=n_samp, n_neg=n_neg,
                                  margin=margin, eps=eps, block_b=8)
    loss_tiled = jax.block_until_ready(loss_tiled)
    assert jnp.allclose(loss_tiled, ref_exact, rtol=1e-3, atol=1e-4), (loss_tiled, ref_exact)

    print("KERNEL_OK")
</pallas_src>

<mosaic_0001>
module attributes {stable_mosaic.version = 11 : i64} {
  func.func @_normalize_t_kernel(%arg0: i32, %arg1: memref<128x128xf32, #tpu.memory_space<vmem>>, %arg2: memref<128x128xbf16, #tpu.memory_space<vmem>>) attributes {dimension_semantics = [#tpu.dimension_semantics<parallel>], iteration_bounds = array<i64: 1>, scalar_prefetch = 0 : i64, scratch_operands = 0 : i64, tpu.core_type = #tpu.core_type<tc>, window_params = [{transform_indices = @transform_0, window_bounds = array<i64: 128, 128>}, {transform_indices = @transform_1, window_bounds = array<i64: 128, 128>}]} {
    %c0 = arith.constant 0 : index
    %c0_0 = arith.constant 0 : index
    %0 = vector.load %arg1[%c0, %c0_0] : memref<128x128xf32, #tpu.memory_space<vmem>>, vector<128x128xf32>
    %1 = arith.mulf %0, %0 : vector<128x128xf32>
    %cst = arith.constant dense<0.000000e+00> : vector<128xf32>
    %2 = vector.multi_reduction <add>, %1, %cst [1] : vector<128x128xf32> to vector<128xf32>
    %3 = vector.shape_cast %2 : vector<128xf32> to vector<128x1xf32>
    %cst_1 = arith.constant 1.000000e-16 : f32
    %4 = vector.broadcast %cst_1 : f32 to vector<128x1xf32>
    %5 = arith.maximumf %3, %4 : vector<128x1xf32>
    %6 = math.rsqrt %5 : vector<128x1xf32>
    %7 = vector.broadcast %6 : vector<128x1xf32> to vector<128x128xf32>
    %8 = arith.mulf %0, %7 : vector<128x128xf32>
    %9 = tpu.transpose %8, [1, 0] : vector<128x128xf32> -> vector<128x128xf32>
    %10 = arith.truncf %9 : vector<128x128xf32> to vector<128x128xbf16>
    %c0_2 = arith.constant 0 : index
    %c0_3 = arith.constant 0 : index
    %11 = vector.load %arg2[%c0_2, %c0_3] : memref<128x128xbf16, #tpu.memory_space<vmem>>, vector<128x128xbf16>
    tpu.vector_store %arg2[%c0_2, %c0_3], %10 {strides = array<i32>} : memref<128x128xbf16, #tpu.memory_space<vmem>>, vector<128x128xbf16>,
    return
  }
  func.func @transform_0(%arg0: i32) -> (i32, i32) {
    %c0_i32 = arith.constant 0 : i32
    %c0_i32_0 = arith.constant 0 : i32
    return %arg0, %c0_i32 : i32, i32
  }
  func.func @transform_1(%arg0: i32) -> (i32, i32) {
    %c0_i32 = arith.constant 0 : i32
    %c0_i32_0 = arith.constant 0 : i32
    return %c0_i32, %arg0 : i32, i32
  }
}

</mosaic_0001>

<llo_original>
// kernel: tpu_custom_call.1
$region0: #{tpu_custom_call.1}
  #allocation0 [shape = 'u32[]', space=smem, size = 0x4, offset = 0x4, fixed_abs, tag = 'smem constant byte address 0x4 - core index']
  #allocation1 [shape = 'u32[144,128]{1,0:T(1,128)}', space=vmem, size = 0x12000, scoped, tag = 'internal scratch']
  %s0 = inlined_call_operand.hbm [shape: f32[128,128], index: 0, kind: input, shape index: {}]
  %s1 = inlined_call_operand.hbm [shape: bf16[128,128], index: 1, kind: output, shape index: {}]
  %s2 = sld [smem:[#allocation0]]
  $region18: #{tpu_custom_call.1} parent=0
    _
  %s4 = ssub.s32 1, %s2
  %s5 = scalar_select 0, %s4, %s2
  $region1: #{tpu_custom_call.1} parent=0
    #allocation2 [shape = 'u8[65536]{0}', space=vmem, size = 0x10000, scoped, tag = 'input window, operand 0, single buffered']
    #allocation3 [shape = 's32[1]{0}', space=sflag, size = 0x4, scoped, tag = 'scoped memory for tpu_custom_call.1']
    #allocation4 [shape = 's32[1]{0}', space=sflag, size = 0x4, scoped, tag = 'scoped memory for tpu_custom_call.1']
    #allocation5 [shape = 'u8[32768]{0}', space=vmem, size = 0x8000, scoped, tag = 'output window, operand 0, single buffered']
    %6 = vsyncpa [#allocation3], 0
    %7 = vsyncpa [#allocation4], 0
    // Predicated region
    $region2: #{tpu_custom_call.1} parent=1 // pred_check
      _
    $region3: #{tpu_custom_call.1} parent=1 // pred_check_branch
      %9 = sbr.rel (0) target = $region5
    $region4: #{tpu_custom_call.1} parent=1 // pred_region
      %s11 = ssub.s32 2048, 2048
      %12 = vsyncadd [#allocation3], %s11
      %s13 = sshll.u32 [#allocation2], 4
      %s14 = int_to_ptr.vmem [resolvable:$true] %s13
      %19 = dma.hbm_to_vmem [thread:$0]  %s0, 2048, %s14, [#allocation3], 128, 128, 8
    $region5: #{tpu_custom_call.1} parent=1 // pred_fallthru
      _
    // Predicated region
    $region6: #{tpu_custom_call.1} parent=1 // pred_check
      _
    $region7: #{tpu_custom_call.1} parent=1 // pred_check_branch
      %21 = sbr.rel (0) target = $region9
    $region8: #{tpu_custom_call.1} parent=1 // pred_region
      %22 = dma.done [#allocation3], 2048
    $region9: #{tpu_custom_call.1} parent=1 // pred_fallthru
      _
    %v23 = vld [vmem:[#allocation2] sm:$0xff]
    %v24 = vld [vmem:[#allocation2 + $0x8] sm:$0xff]
    %v25 = vld [vmem:[#allocation2 + $0x10] sm:$0xff]
    %v26 = vld [vmem:[#allocation2 + $0x18] sm:$0xff]
    %v27 = vld [vmem:[#allocation2 + $0x20] sm:$0xff]
    %v28 = vld [vmem:[#allocation2 + $0x28] sm:$0xff]
    %v29 = vld [vmem:[#allocation2 + $0x30] sm:$0xff]
    %v30 = vld [vmem:[#allocation2 + $0x38] sm:$0xff]
    %v31 = vld [vmem:[#allocation2 + $0x40] sm:$0xff]
    %v32 = vld [vmem:[#allocation2 + $0x48] sm:$0xff]
    %v33 = vld [vmem:[#allocation2 + $0x50] sm:$0xff]
    %v34 = vld [vmem:[#allocation2 + $0x58] sm:$0xff]
    %v35 = vld [vmem:[#allocation2 + $0x60] sm:$0xff]
    %v36 = vld [vmem:[#allocation2 + $0x68] sm:$0xff]
    %v37 = vld [vmem:[#allocation2 + $0x70] sm:$0xff]
    %v38 = vld [vmem:[#allocation2 + $0x78] sm:$0xff]
    %v39 = vmul.f32 %v23, %v23
    %v40 = vmul.f32 %v24, %v24
    %v41 = vmul.f32 %v25, %v25
    %v42 = vmul.f32 %v26, %v26
    %v43 = vmul.f32 %v27, %v27
    %v44 = vmul.f32 %v28, %v28
    %v45 = vmul.f32 %v29, %v29
    %v46 = vmul.f32 %v30, %v30
    %v47 = vmul.f32 %v31, %v31
    %v48 = vmul.f32 %v32, %v32
    %v49 = vmul.f32 %v33, %v33
    %v50 = vmul.f32 %v34, %v34
    %v51 = vmul.f32 %v35, %v35
    %v52 = vmul.f32 %v36, %v36
    %v53 = vmul.f32 %v37, %v37
    %v54 = vmul.f32 %v38, %v38
    %55 = vadd.xlane.f32.xlu0 %v39
    %v56 = vpop.xlane.xlu0 %55
    %57 = vadd.xlane.f32.xlu0 %v40
    %v58 = vpop.xlane.xlu0 %57
    %59 = vadd.xlane.f32.xlu0 %v41
    %v60 = vpop.xlane.xlu0 %59
    %61 = vadd.xlane.f32.xlu0 %v42
    %v62 = vpop.xlane.xlu0 %61
    %63 = vadd.xlane.f32.xlu0 %v43
    %v64 = vpop.xlane.xlu0 %63
    %65 = vadd.xlane.f32.xlu0 %v44
    %v66 = vpop.xlane.xlu0 %65
    %67 = vadd.xlane.f32.xlu0 %v45
    %v68 = vpop.xlane.xlu0 %67
    %69 = vadd.xlane.f32.xlu0 %v46
    %v70 = vpop.xlane.xlu0 %69
    %71 = vadd.xlane.f32.xlu0 %v47
    %v72 = vpop.xlane.xlu0 %71
    %73 = vadd.xlane.f32.xlu0 %v48
    %v74 = vpop.xlane.xlu0 %73
    %75 = vadd.xlane.f32.xlu0 %v49
    %v76 = vpop.xlane.xlu0 %75
    %77 = vadd.xlane.f32.xlu0 %v50
    %v78 = vpop.xlane.xlu0 %77
    %79 = vadd.xlane.f32.xlu0 %v51
    %v80 = vpop.xlane.xlu0 %79
    %81 = vadd.xlane.f32.xlu0 %v52
    %v82 = vpop.xlane.xlu0 %81
    %83 = vadd.xlane.f32.xlu0 %v53
    %v84 = vpop.xlane.xlu0 %83
    %85 = vadd.xlane.f32.xlu0 %v54
    %v86 = vpop.xlane.xlu0 %85
    %v87 = vmax.f32 %v56, 1e-16
    %v88 = vmax.f32 %v58, 1e-16
    %v89 = vmax.f32 %v60, 1e-16
    %v90 = vmax.f32 %v62, 1e-16
    %v91 = vmax.f32 %v64, 1e-16
    %v92 = vmax.f32 %v66, 1e-16
    %v93 = vmax.f32 %v68, 1e-16
    %v94 = vmax.f32 %v70, 1e-16
    %v95 = vmax.f32 %v72, 1e-16
    %v96 = vmax.f32 %v74, 1e-16
    %v97 = vmax.f32 %v76, 1e-16
    %v98 = vmax.f32 %v78, 1e-16
    %v99 = vmax.f32 %v80, 1e-16
    %v100 = vmax.f32 %v82, 1e-16
    %v101 = vmax.f32 %v84, 1e-16
    %v102 = vmax.f32 %v86, 1e-16
    %v103 = vrsqrt.pop %v87
    %v104 = vrsqrt.pop %v88
    %v105 = vrsqrt.pop %v89
    %v106 = vrsqrt.pop %v90
    %v107 = vrsqrt.pop %v91
    %v108 = vrsqrt.pop %v92
    %v109 = vrsqrt.pop %v93
    %v110 = vrsqrt.pop %v94
    %v111 = vrsqrt.pop %v95
    %v112 = vrsqrt.pop %v96
    %v113 = vrsqrt.pop %v97
    %v114 = vrsqrt.pop %v98
    %v115 = vrsqrt.pop %v99
    %v116 = vrsqrt.pop %v100
    %v117 = vrsqrt.pop %v101
    %v118 = vrsqrt.pop %v102
    %v119 = vmul.f32 %v23, %v103
    %v120 = vmul.f32 %v24, %v104
    %v121 = vmul.f32 %v25, %v105
    %v122 = vmul.f32 %v26, %v106
    %v123 = vmul.f32 %v27, %v107
    %v124 = vmul.f32 %v28, %v108
    %v125 = vmul.f32 %v29, %v109
    %v126 = vmul.f32 %v30, %v110
    %v127 = vmul.f32 %v31, %v111
    %v128 = vmul.f32 %v32, %v112
    %v129 = vmul.f32 %v33, %v113
    %v130 = vmul.f32 %v34, %v114
    %v131 = vmul.f32 %v35, %v115
    %v132 = vmul.f32 %v36, %v116
    %v133 = vmul.f32 %v37, %v117
    %v134 = vmul.f32 %v38, %v118
    %135 = vxpose.xlu0.b32.start [1/16] %v119, 128
    %136 = vxpose.xlu0.b32.cont [2/16] %v120, 128
    %137 = vxpose.xlu0.b32.cont [3/16] %v121, 128
    %138 = vxpose.xlu0.b32.cont [4/16] %v122, 128
    %139 = vxpose.xlu0.b32.cont [5/16] %v123, 128
    %140 = vxpose.xlu0.b32.cont [6/16] %v124, 128
    %141 = vxpose.xlu0.b32.cont [7/16] %v125, 128
    %142 = vxpose.xlu0.b32.cont [8/16] %v126, 128
    %143 = vxpose.xlu0.b32.cont [9/16] %v127, 128
    %144 = vxpose.xlu0.b32.cont [10/16] %v128, 128
    %145 = vxpose.xlu0.b32.cont [11/16] %v129, 128
    %146 = vxpose.xlu0.b32.cont [12/16] %v130, 128
    %147 = vxpose.xlu0.b32.cont [13/16] %v131, 128
    %148 = vxpose.xlu0.b32.cont [14/16] %v132, 128
    %149 = vxpose.xlu0.b32.cont [15/16] %v133, 128
    %150 = vxpose.xlu0.b32.end [16/16] %v134, 128
    %v151 = vpop.trf.xlu0
    %v152 = vpop.trf.xlu0
    %v153 = vpop.trf.xlu0
    %v154 = vpop.trf.xlu0
    %v155 = vpop.trf.xlu0
    %v156 = vpop.trf.xlu0
    %v157 = vpop.trf.xlu0
    %v158 = vpop.trf.xlu0
    %v159 = vpop.trf.xlu0
    %v160 = vpop.trf.xlu0
    %v161 = vpop.trf.xlu0
    %v162 = vpop.trf.xlu0
    %v163 = vpop.trf.xlu0
    %v164 = vpop.trf.xlu0
    %v165 = vpop.trf.xlu0
    %v166 = vpop.trf.xlu0
    %v167 = vpack.c.bf16 %v152, %v151
    %v168 = vpack.c.bf16 %v154, %v153
    %v169 = vpack.c.bf16 %v156, %v155
    %v170 = vpack.c.bf16 %v158, %v157
    %v171 = vpack.c.bf16 %v160, %v159
    %v172 = vpack.c.bf16 %v162, %v161
    %v173 = vpack.c.bf16 %v164, %v163
    %v174 = vpack.c.bf16 %v166, %v165
    %v183 = vunpack.c.l.b16 %v167
    %v184 = vunpack.c.h.b16 %v167
    %v185 = vunpack.c.l.b16 %v168
    %v186 = vunpack.c.h.b16 %v168
    %v187 = vunpack.c.l.b16 %v169
    %v188 = vunpack.c.h.b16 %v169
    %v189 = vunpack.c.l.b16 %v170
    %v190 = vunpack.c.h.b16 %v170
    %v191 = vunpack.c.l.b16 %v171
    %v192 = vunpack.c.h.b16 %v171
    %v193 = vunpack.c.l.b16 %v172
    %v194 = vunpack.c.h.b16 %v172
    %v195 = vunpack.c.l.b16 %v173
    %v196 = vunpack.c.h.b16 %v173
    %v197 = vunpack.c.l.b16 %v174
    %v198 = vunpack.c.h.b16 %v174
    %v199 = vpack.c.b16 %v183, %v183
    %v200 = vpack.c.b16 %v184, %v184
    %v201 = vpack.c.b16 %v185, %v185
    %v202 = vpack.c.b16 %v186, %v186
    %v203 = vpack.c.b16 %v187, %v187
    %v204 = vpack.c.b16 %v188, %v188
    %v205 = vpack.c.b16 %v189, %v189
    %v206 = vpack.c.b16 %v190, %v190
    %v207 = vpack.c.b16 %v191, %v191
    %v208 = vpack.c.b16 %v192, %v192
    %v209 = vpack.c.b16 %v193, %v193
    %v210 = vpack.c.b16 %v194, %v194
    %v211 = vpack.c.b16 %v195, %v195
    %v212 = vpack.c.b16 %v196, %v196
    %v213 = vpack.c.b16 %v197, %v197
    %v214 = vpack.c.b16 %v198, %v198
    %231 = vst [vmem:[#allocation5] sm:$0xf] %v199
    %232 = vst [vmem:[#allocation5 + $0x4] sm:$0xf] %v200
    %233 = vst [vmem:[#allocation5 + $0x8] sm:$0xf] %v201
    %234 = vst [vmem:[#allocation5 + $0xc] sm:$0xf] %v202
    %235 = vst [vmem:[#allocation5 + $0x10] sm:$0xf] %v203
    %236 = vst [vmem:[#allocation5 + $0x14] sm:$0xf] %v204
    %237 = vst [vmem:[#allocation5 + $0x18] sm:$0xf] %v205
    %238 = vst [vmem:[#allocation5 + $0x1c] sm:$0xf] %v206
    %239 = vst [vmem:[#allocation5 + $0x20] sm:$0xf] %v207
    %240 = vst [vmem:[#allocation5 + $0x24] sm:$0xf] %v208
    %241 = vst [vmem:[#allocation5 + $0x28] sm:$0xf] %v209
    %242 = vst [vmem:[#allocation5 + $0x2c] sm:$0xf] %v210
    %243 = vst [vmem:[#allocation5 + $0x30] sm:$0xf] %v211
    %244 = vst [vmem:[#allocation5 + $0x34] sm:$0xf] %v212
    %245 = vst [vmem:[#allocation5 + $0x38] sm:$0xf] %v213
    %246 = vst [vmem:[#allocation5 + $0x3c] sm:$0xf] %v214
    // Predicated region
    $region10: #{tpu_custom_call.1} parent=1 // pred_check
      _
    $region11: #{tpu_custom_call.1} parent=1 // pred_check_branch
      %248 = sbr.rel (0) target = $region13
    $region12: #{tpu_custom_call.1} parent=1 // pred_region
      %s250 = ssub.s32 1024, 1024
      %251 = vsyncadd [#allocation4], %s250
      %s252 = sshll.u32 [#allocation5], 4
      %s253 = int_to_ptr.vmem [resolvable:$true] %s252
      %258 = dma.vmem_to_hbm [thread:$0]  %s253, 1024, %s1, [#allocation4], 64, 64, 4
    $region13: #{tpu_custom_call.1} parent=1 // pred_fallthru
      _
    // Predicated region
    $region14: #{tpu_custom_call.1} parent=1 // pred_check
      _
    $region15: #{tpu_custom_call.1} parent=1 // pred_check_branch
      %260 = sbr.rel (0) target = $region17
    $region16: #{tpu_custom_call.1} parent=1 // pred_region
      %261 = dma.done [#allocation4], 1024
    $region17: #{tpu_custom_call.1} parent=1 // pred_fallthru
      _
    %262 = vsyncpa [#allocation3], 1
    %263 = vsyncpa [#allocation4], 1

</llo_original>
